<compile_context>
chip_gen: v6e
topology: v6e:2x2x1
jax: 0.10.0
libtpu: 0.0.40
codegen_flags: <defaults>
</compile_context>

<pallas_src>
import jax
import jax.numpy as jnp
from jax import lax
from jax.experimental import pallas as pl
from jax.experimental.pallas import tpu as pltpu


def _logreg_kernel(w_ref, b_ref, x_ref, o_ref):
    # w_ref/b_ref: (1, 1) f32 scalars in SMEM. x_ref/o_ref: lane-dense VMEM
    # tiles. Linear(1, 1) degenerates to a scalar FMA; sigmoid goes to the EUP.
    w = w_ref[0, 0]
    b = b_ref[0, 0]
    xf = x_ref[...].astype(jnp.float32)     # free in-vreg upcast for bf16 I/O
    o_ref[...] = jax.nn.sigmoid(xf * w + b).astype(o_ref.dtype)


def _round_up(a, m):
    return ((a + m - 1) // m) * m


def _pick_lane_width(n):
    # Largest multiple of 128 (<= 1024) dividing n, so the slab reshape is a
    # zero-copy bitcast.  Falls back to 1024 (tail handled by XLA epilogue).
    for lw in (1024, 512, 256, 128):
        if n % lw == 0:
            return lw
    return 1024


def _default_block_bytes():
    # ~4 MiB/block everywhere; ~8 MiB on 64-MiB-VMEM parts (v7x) where HBM is
    # fast enough that per-grid-step overhead matters more.
    try:
        info = pltpu.get_tpu_info()
        vmem = getattr(info, "vmem_capacity_bytes", None)
        if vmem is not None and vmem <= 64 * 1024 * 1024:
            return 8 << 20
    except Exception:
        pass
    return 4 << 20


def logistic_regression(x, weight, bias, *, block_bytes=None):
    """sigmoid(x @ weight.T + bias) for Linear(1, 1). x: (N, 1) -> (N, 1)."""
    n, f = x.shape
    assert f == 1, "Linear(1, 1) expects a single input feature"
    dtype = x.dtype
    assert jnp.issubdtype(dtype, jnp.floating), "expected a floating dtype"
    itemsize = jnp.dtype(dtype).itemsize
    # Sublane minimum per dtype: 8 (f32), 16 (bf16/f16), 32 (8-bit).
    min_sub = 8 * max(1, 4 // itemsize)
    if block_bytes is None:
        block_bytes = _default_block_bytes()

    flat = x.reshape(-1)
    lane_width = _pick_lane_width(n)
    main_n = (n // lane_width) * lane_width
    rem = n - main_n

    w2 = jnp.asarray(weight, jnp.float32).reshape(1, 1)
    b2 = jnp.asarray(bias, jnp.float32).reshape(1, 1)

    main_out_flat = None
    if main_n > 0:
        rows = main_n // lane_width
        # Zero-copy bitcast when rem == 0; otherwise only the aligned prefix.
        slab = (flat if rem == 0 else flat[:main_n]).reshape(rows, lane_width)

        if rows < min_sub:
            br = rows                      # block equals full dim -> allowed
        else:
            br = max(min_sub,
                     (block_bytes // (lane_width * itemsize)) // min_sub * min_sub)
            if rows >= 2 * min_sub:
                # Keep >= 2 grid blocks so both v7x TensorCores get work.
                br = min(br, _round_up(pl.cdiv(rows, 2), min_sub))
            br = min(br, (rows // min_sub) * min_sub)
        grid = (pl.cdiv(rows, br),)        # ragged last block handled by Pallas

        main_out = pl.pallas_call(
            _logreg_kernel,
            out_shape=jax.ShapeDtypeStruct((rows, lane_width), dtype),
            grid=grid,
            in_specs=[
                pl.BlockSpec(memory_space=pltpu.MemorySpace.SMEM),   # weight
                pl.BlockSpec(memory_space=pltpu.MemorySpace.SMEM),   # bias
                pl.BlockSpec((br, lane_width), lambda i: (i, 0)),    # x tile
            ],
            out_specs=pl.BlockSpec((br, lane_width), lambda i: (i, 0)),
            compiler_params=pltpu.CompilerParams(
                dimension_semantics=("parallel",),
                vmem_limit_bytes=48 << 20,
            ),
            cost_estimate=pl.CostEstimate(
                flops=2 * main_n,
                transcendentals=main_n,
                bytes_accessed=2 * main_n * itemsize,
            ),
        )(w2, b2, slab)
        main_out_flat = main_out.reshape(-1)

    if rem > 0:
        # Tiny XLA epilogue on the (< lane_width) tail.
        tail = lax.slice(flat, (main_n,), (n,))
        tail_out = jax.nn.sigmoid(
            tail.astype(jnp.float32) * w2[0, 0] + b2[0, 0]).astype(dtype)
        if main_out_flat is None:
            out_flat = tail_out
        else:
            out_flat = jnp.concatenate([main_out_flat, tail_out])
    else:
        out_flat = main_out_flat

    return out_flat.reshape(n, 1)


if __name__ == "__main__":
    key = jax.random.PRNGKey(0)
    kx1, kx2, kx3, kx4, kw, kb = jax.random.split(key, 6)

    # Deterministic init mimicking torch.nn.Linear(1, 1):
    # uniform(-1/sqrt(in_features), 1/sqrt(in_features)), in_features = 1.
    weight = jax.random.uniform(kw, (1, 1), minval=-1.0, maxval=1.0,
                                dtype=jnp.float32)
    bias = jax.random.uniform(kb, (1,), minval=-1.0, maxval=1.0,
                              dtype=jnp.float32)

    def ref(x):
        return jax.nn.sigmoid(x @ weight.T + bias)

    # 1) zero-copy single-block path (N multiple of lane width).
    x1 = jax.random.normal(kx1, (1024, 1), dtype=jnp.float32)
    y1 = jax.block_until_ready(logistic_regression(x1, weight, bias))
    assert y1.shape == (1024, 1)
    assert jnp.allclose(y1, ref(x1), atol=1e-5)

    # 2) multi-block grid (megacore path), still zero-copy.
    x2 = jax.random.normal(kx2, (131072, 1), dtype=jnp.float32)
    y2 = jax.block_until_ready(logistic_regression(x2, weight, bias))
    assert y2.shape == (131072, 1)
    assert jnp.allclose(y2, ref(x2), atol=1e-5)

    # 3) kernel prefix + tiny XLA tail epilogue (N not multiple of 128).
    x3 = jax.random.normal(kx3, (2500, 1), dtype=jnp.float32)
    y3 = jax.block_until_ready(logistic_regression(x3, weight, bias))
    assert y3.shape == (2500, 1)
    assert jnp.allclose(y3, ref(x3), atol=1e-5)

    # 4) tiny batch (pure epilogue path).
    x4 = jax.random.normal(kx4, (64, 1), dtype=jnp.float32)
    y4 = jax.block_until_ready(logistic_regression(x4, weight, bias))
    assert y4.shape == (64, 1)
    assert jnp.allclose(y4, ref(x4), atol=1e-5)

    print("KERNEL_OK")
</pallas_src>

<mosaic_0001>
module attributes {stable_mosaic.version = 11 : i64} {
  func.func @_logreg_kernel(%arg0: i32, %arg1: memref<1x1xf32, #tpu.memory_space<smem>>, %arg2: memref<1x1xf32, #tpu.memory_space<smem>>, %arg3: memref<1x1024xf32, #tpu.memory_space<vmem>>, %arg4: memref<1x1024xf32, #tpu.memory_space<vmem>>) attributes {dimension_semantics = [#tpu.dimension_semantics<parallel>], iteration_bounds = array<i64: 1>, scalar_prefetch = 0 : i64, scratch_operands = 0 : i64, tpu.core_type = #tpu.core_type<tc>, window_params = [{transform_indices = @transform_0, window_bounds = array<i64: 1, 1>}, {transform_indices = @transform_1, window_bounds = array<i64: 1, 1>}, {transform_indices = @transform_2, window_bounds = array<i64: 1, 1024>}, {transform_indices = @transform_3, window_bounds = array<i64: 1, 1024>}]} {
    %c0 = arith.constant 0 : index
    %c0_0 = arith.constant 0 : index
    %0 = memref.load %arg1[%c0, %c0_0] : memref<1x1xf32, #tpu.memory_space<smem>>
    %c0_1 = arith.constant 0 : index
    %c0_2 = arith.constant 0 : index
    %1 = memref.load %arg2[%c0_1, %c0_2] : memref<1x1xf32, #tpu.memory_space<smem>>
    %c0_3 = arith.constant 0 : index
    %c0_4 = arith.constant 0 : index
    %2 = vector.load %arg3[%c0_3, %c0_4] : memref<1x1024xf32, #tpu.memory_space<vmem>>, vector<1x1024xf32>
    %3 = vector.broadcast %0 : f32 to vector<1x1024xf32>
    %4 = arith.mulf %2, %3 : vector<1x1024xf32>
    %5 = vector.broadcast %1 : f32 to vector<1x1024xf32>
    %6 = arith.addf %4, %5 : vector<1x1024xf32>
    %7 = arith.negf %6 : vector<1x1024xf32>
    %8 = math.exp %7 : vector<1x1024xf32>
    %cst = arith.constant 1.000000e+00 : f32
    %9 = vector.broadcast %cst : f32 to vector<1x1024xf32>
    %10 = arith.addf %9, %8 : vector<1x1024xf32>
    %11 = arith.divf %9, %10 : vector<1x1024xf32>
    %c0_5 = arith.constant 0 : index
    %c0_6 = arith.constant 0 : index
    %12 = vector.load %arg4[%c0_5, %c0_6] : memref<1x1024xf32, #tpu.memory_space<vmem>>, vector<1x1024xf32>
    tpu.vector_store %arg4[%c0_5, %c0_6], %11 {strides = array<i32>} : memref<1x1024xf32, #tpu.memory_space<vmem>>, vector<1x1024xf32>,
    return
  }
  func.func @transform_0(%arg0: i32) -> (i32, i32) {
    %c0_i32 = arith.constant 0 : i32
    %c0_i32_0 = arith.constant 0 : i32
    %c0_i32_1 = arith.constant 0 : i32
    return %c0_i32, %c0_i32_0 : i32, i32
  }
  func.func @transform_1(%arg0: i32) -> (i32, i32) {
    %c0_i32 = arith.constant 0 : i32
    %c0_i32_0 = arith.constant 0 : i32
    %c0_i32_1 = arith.constant 0 : i32
    return %c0_i32, %c0_i32_0 : i32, i32
  }
  func.func @transform_2(%arg0: i32) -> (i32, i32) {
    %c0_i32 = arith.constant 0 : i32
    %c0_i32_0 = arith.constant 0 : i32
    return %arg0, %c0_i32 : i32, i32
  }
  func.func @transform_3(%arg0: i32) -> (i32, i32) {
    %c0_i32 = arith.constant 0 : i32
    %c0_i32_0 = arith.constant 0 : i32
    return %arg0, %c0_i32 : i32, i32
  }
}

</mosaic_0001>

<llo_original>
// kernel: tpu_custom_call.1
$region0: #{tpu_custom_call.1}
  #allocation0 [shape = 'u32[]', space=smem, size = 0x4, offset = 0x4, fixed_abs, tag = 'smem constant byte address 0x4 - core index']
  #allocation1 [shape = 'u32[144,128]{1,0:T(1,128)}', space=vmem, size = 0x12000, scoped, tag = 'internal scratch']
  #allocation2 [shape = 'f32[1,1]{1,0:T(1,128)S(6)}', space=smem, size = 0x200, scoped, tag = 'scoped memory for tpu_custom_call.1']
  #allocation3 [shape = 'f32[1,1]{1,0:T(1,128)S(6)}', space=smem, size = 0x200, scoped, tag = 'scoped memory for tpu_custom_call.1']
  %s0 = inlined_call_operand.<no memory space> [shape: f32[1,1], index: 0, kind: input, shape index: {}]
  %s1 = inlined_call_operand.<no memory space> [shape: f32[1,1], index: 1, kind: input, shape index: {}]
  %s2 = inlined_call_operand.hbm [shape: f32[1,1024], index: 2, kind: input, shape index: {}]
  %s3 = inlined_call_operand.hbm [shape: f32[1,1024], index: 3, kind: output, shape index: {}]
  %s4 = sld [smem:[#allocation0]]
  $region26: #{tpu_custom_call.1} parent=0
    _
  %s6 = ssub.s32 1, %s4
  %s7 = scalar_select 0, %s6, %s4
  %8 = sst [smem:[#allocation2]] %s0
  %9 = sst [smem:[#allocation3]] %s1
  $region1: #{tpu_custom_call.1} parent=0
    #allocation4 [shape = 'u8[4096]{0}', space=vmem, size = 0x1000, scoped, tag = 'input window, operand 2, single buffered']
    #allocation5 [shape = 's32[1]{0}', space=sflag, size = 0x4, scoped, tag = 'scoped memory for tpu_custom_call.1']
    #allocation6 [shape = 's32[1]{0}', space=sflag, size = 0x4, scoped, tag = 'scoped memory for tpu_custom_call.1']
    #allocation7 [shape = 'u8[4096]{0}', space=vmem, size = 0x1000, scoped, tag = 'output window, operand 0, single buffered']
    %10 = vsyncpa [#allocation5], 0
    %11 = vsyncpa [#allocation6], 0
    // Predicated region
    $region2: #{tpu_custom_call.1} parent=1 // pred_check
      _
    $region3: #{tpu_custom_call.1} parent=1 // pred_check_branch
      %13 = sbr.rel (0) target = $region5
    $region4: #{tpu_custom_call.1} parent=1 // pred_region
      _
    $region5: #{tpu_custom_call.1} parent=1 // pred_fallthru
      _
    // Predicated region
    $region6: #{tpu_custom_call.1} parent=1 // pred_check
      _
    $region7: #{tpu_custom_call.1} parent=1 // pred_check_branch
      %15 = sbr.rel (0) target = $region9
    $region8: #{tpu_custom_call.1} parent=1 // pred_region
      _
    $region9: #{tpu_custom_call.1} parent=1 // pred_fallthru
      _
    // Predicated region
    $region10: #{tpu_custom_call.1} parent=1 // pred_check
      _
    $region11: #{tpu_custom_call.1} parent=1 // pred_check_branch
      %17 = sbr.rel (0) target = $region13
    $region12: #{tpu_custom_call.1} parent=1 // pred_region
      %s19 = ssub.s32 128, 128
      %20 = vsyncadd [#allocation5], %s19
      %s22 = sshll.u32 [#allocation4], 4
      %s23 = int_to_ptr.vmem [resolvable:$true] %s22
      %25 = dma.hbm_to_vmem [thread:$0]  %s2, 128, %s23, [#allocation5]
    $region13: #{tpu_custom_call.1} parent=1 // pred_fallthru
      _
    // Predicated region
    $region14: #{tpu_custom_call.1} parent=1 // pred_check
      _
    $region15: #{tpu_custom_call.1} parent=1 // pred_check_branch
      %27 = sbr.rel (0) target = $region17
    $region16: #{tpu_custom_call.1} parent=1 // pred_region
      %28 = dma.done [#allocation5], 128
    $region17: #{tpu_custom_call.1} parent=1 // pred_fallthru
      _
    %s29 = sld [smem:[#allocation2]]
    %s30 = sld [smem:[#allocation3]]
    %v31 = vld [vmem:[#allocation4] sm:$0xff]
    %v32 = vstv %s29
    %v33 = vmul.f32 %v31, %v32
    %v34 = vstv %s30
    %v35 = vadd.f32 %v33, %v34
    %v36 = vxor.u32 %v35, 2147483648
    %v37 = vmul.f32 %v36, 1.442695
    %v38 = vpow.pop %v37
    %v39 = vadd.f32 %v38, 1.0
    %v40 = vrcp.pop %v39
    %v41 = vmul.f32 1.0, %v40
    %42 = vst [vmem:[#allocation7] sm:$0xff] %v41
    // Predicated region
    $region18: #{tpu_custom_call.1} parent=1 // pred_check
      _
    $region19: #{tpu_custom_call.1} parent=1 // pred_check_branch
      %44 = sbr.rel (0) target = $region21
    $region20: #{tpu_custom_call.1} parent=1 // pred_region
      %s46 = ssub.s32 128, 128
      %47 = vsyncadd [#allocation6], %s46
      %s49 = sshll.u32 [#allocation7], 4
      %s50 = int_to_ptr.vmem [resolvable:$true] %s49
      %52 = dma.vmem_to_hbm [thread:$0]  %s50, 128, %s3, [#allocation6]
    $region21: #{tpu_custom_call.1} parent=1 // pred_fallthru
      _
    // Predicated region
    $region22: #{tpu_custom_call.1} parent=1 // pred_check
      _
    $region23: #{tpu_custom_call.1} parent=1 // pred_check_branch
      %54 = sbr.rel (0) target = $region25
    $region24: #{tpu_custom_call.1} parent=1 // pred_region
      %55 = dma.done [#allocation6], 128
    $region25: #{tpu_custom_call.1} parent=1 // pred_fallthru
      _
    %56 = vsyncpa [#allocation5], 1
    %57 = vsyncpa [#allocation6], 1

</llo_original>
